<compile_context>
chip_gen: v7x
topology: tpu7x:2x2x1
jax: 0.10.0
libtpu: 0.0.40
codegen_flags: <defaults>
</compile_context>

<pallas_src>
import math

import jax
import jax.numpy as jnp
from jax.experimental import pallas as pl
from jax.experimental.pallas import tpu as pltpu


# ---------------- config (mirrors the PyTorch config fields used) -------------
class Config:
    hidden_size = 32
    num_labels = 3
    downsample_factor = 4
    upsample_output = True
    classifier_dropout = 0.1      # dropout is identity at inference
    hidden_dropout_prob = 0.1
    vocab_size = 64
    type_vocab_size = 2


def _gelu_exact(x):
    # matches transformers get_activation('gelu') (erf-based, not tanh approx)
    return 0.5 * x * (1.0 + jax.lax.erf(x * (1.0 / math.sqrt(2.0))))


# ------------------------------ encoder kernel --------------------------------
def _encoder_kernel(ids_ref, coef_ref, rid_ref, lane_ref,
                    tokbd_ref, deltabd_ref, wbd_ref, bt_ref, hs_ref):
    """One row-tile of packed tokens: fused embedding gather + dense + gelu.

    ids_ref     : (TRp, P)        f32   token ids; masked/padded tokens carry the
                                        out-of-range sentinel V (-> zero one-hot)
    coef_ref    : (TRp, P*(T-1))  f32   {0,1} type coefficients (mask folded in)
    rid_ref     : (P, P*V)        bf16  lane-expansion matrix for ids
    lane_ref    : (1, P*V)        f32   lane index constant: lane[k*V+v] = v
    tokbd_ref   : (P*V, P*H)      bf16  kron(I_P, tok_emb + type_emb[0])
    deltabd_ref : (P*(T-1), P*H)  bf16  kron(I_P, type_emb[1:] - type_emb[0])
    wbd_ref     : (P*H, P*H)      bf16  kron(I_P, W_enc^T)
    bt_ref      : (1,  P*H)       f32   tile(b_enc, P)
    hs_ref      : (TRp, P*H)      f32   packed hidden states (P tokens per row)
    """
    # Lane expansion of the ids: ids_x[r, k*V + v] = ids[r, k].
    # ids <= V=64 are exact in bf16, so the bf16 K=P matmul is exact in f32 acc.
    ids = ids_ref[...].astype(jnp.bfloat16)
    ids_x = jnp.dot(ids, rid_ref[...], preferred_element_type=jnp.float32)

    # One-hot against the precomputed lane constant; the sentinel id V never
    # matches any lane -> all-zero row -> zero embedding (== attention masking).
    oh = (ids_x == lane_ref[...]).astype(jnp.bfloat16)            # (TRp, P*V)

    # Fused gather of (token + type_emb[0]) plus coefficient-weighted type deltas.
    x = jnp.dot(oh, tokbd_ref[...], preferred_element_type=jnp.float32)
    x = x + jnp.dot(coef_ref[...].astype(jnp.bfloat16), deltabd_ref[...],
                    preferred_element_type=jnp.float32)

    # TODO(synk): the real ElectraForPreTraining charformer discriminator (GBST
    # downsampling + multi-layer transformer encoder) is an external module; it
    # is replaced here by a deterministic single dense+gelu layer.
    h = jnp.dot(x.astype(jnp.bfloat16), wbd_ref[...],
                preferred_element_type=jnp.float32) + bt_ref[...]
    hs_ref[...] = _gelu_exact(h)                                  # lane-dense f32
    # TODO(synk): on v7x the kernel is HBM-write-bound; storing hs in bfloat16
    # would ~halve traffic, but the reference module returns f32 hidden_states.


# --------------------------------- wrapper ------------------------------------
def _full_spec(a):
    # full-array block; index map works both with and without a grid axis
    return pl.BlockSpec(a.shape, lambda *_, n=a.ndim: (0,) * n)


def prepare_params(params, config):
    """One-time packing of parameters into kernel-friendly (lane-dense) layouts."""
    H = config.hidden_size
    V, T = config.vocab_size, config.type_vocab_size
    assert 128 % H == 0, "hidden_size must divide 128 for lane packing"
    assert T >= 2, "type-delta path assumes type_vocab_size >= 2"
    P = 128 // H
    eye_p = jnp.eye(P, dtype=jnp.float32)

    # lane-expansion matrix R[k, k*V + v] = 1 and lane index constant
    r_id = (jnp.arange(P * V)[None, :] // V
            == jnp.arange(P)[:, None]).astype(jnp.bfloat16)            # (P, P*V)
    lane_v = (jnp.arange(P * V) % V).astype(jnp.float32)[None, :]      # (1, P*V)

    tok_typ0 = params["tok_emb"] + params["type_emb"][0:1]             # (V, H)
    delta = params["type_emb"][1:] - params["type_emb"][0:1]           # (T-1, H)

    return dict(
        r_id=r_id, lane_v=lane_v,
        tok_bd=jnp.kron(eye_p, tok_typ0).astype(jnp.bfloat16),         # (P*V, 128)
        delta_bd=jnp.kron(eye_p, delta).astype(jnp.bfloat16),          # (P*(T-1),128)
        w_bd=jnp.kron(eye_p, params["we_t"]).astype(jnp.bfloat16),     # (128, 128)
        b_til=jnp.tile(params["be"], (1, P)),                          # (1, 128)
        # tiny classification head stays f32 (runs as plain jnp in the wrapper)
        w1_t=params["w1_t"], b1=params["b1"],
        w2_t=params["w2_t"], b2=params["b2"],
    )


def electra_charformer_for_classification(packed, config, input_ids,
                                           attention_mask, token_type_ids=None,
                                           labels=None):
    B, S = input_ids.shape
    H, L = config.hidden_size, config.num_labels
    V, T = config.vocab_size, config.type_vocab_size
    P = 128 // H
    N = B * S

    if token_type_ids is None:
        token_type_ids = jnp.zeros_like(input_ids)

    # --- glue (wrapper-side, free): flatten tokens, fold attention_mask into an
    # out-of-range sentinel id (-> zero embedding) and into the type coefficients,
    # then pack P tokens per 128-lane row.
    mask = attention_mask.reshape(-1) > 0
    ids_eff = jnp.where(mask, input_ids.reshape(-1), V).astype(jnp.float32)
    tids = token_type_ids.reshape(-1)
    coef = (mask[:, None] & (tids[:, None] == jnp.arange(1, T)[None, :])
            ).astype(jnp.float32)                                   # (N, T-1)

    # ------- tiling: big tiles to amortize step overhead, >= 2 tiles when the
    # input allows so v7x's two TensorCores both get work.
    np_rows = -(-N // P)                       # packed rows actually needed
    MAX_TRP = 2048                             # 2048 packed rows = 8192 tokens
    if np_rows < 16:
        trp = np_rows                          # single full-array tile (tiny input)
    else:
        half = -(-np_rows // 2)
        trp = min(MAX_TRP, ((half + 7) // 8) * 8)   # multiple of 8 sublane rows
    num_tiles = -(-np_rows // trp)
    np_total = num_tiles * trp

    pad = np_total * P - N
    ids_p = jnp.pad(ids_eff, (0, pad), constant_values=float(V)
                    ).reshape(np_total, P)
    coef_p = jnp.pad(coef, ((0, pad), (0, 0))).reshape(np_total, P * (T - 1))

    # ---------------- encoder kernel: tiled + pipelined over packed rows ------
    hs_packed = pl.pallas_call(
        _encoder_kernel,
        grid=(num_tiles,),
        in_specs=[
            pl.BlockSpec((trp, P), lambda i: (i, 0)),               # token ids
            pl.BlockSpec((trp, P * (T - 1)), lambda i: (i, 0)),     # type coeffs
            _full_spec(packed["r_id"]), _full_spec(packed["lane_v"]),
            _full_spec(packed["tok_bd"]), _full_spec(packed["delta_bd"]),
            _full_spec(packed["w_bd"]), _full_spec(packed["b_til"]),
        ],
        out_specs=pl.BlockSpec((trp, P * H), lambda i: (i, 0)),     # lane-dense
        out_shape=jax.ShapeDtypeStruct((np_total, P * H), jnp.float32),
        compiler_params=pltpu.CompilerParams(
            dimension_semantics=("parallel",),      # 2-TC sharding on v7x
            vmem_limit_bytes=32 * 1024 * 1024,      # safe on 64 MiB v7x VMEM
        ),
    )(ids_p, coef_p, packed["r_id"], packed["lane_v"],
      packed["tok_bd"], packed["delta_bd"], packed["w_bd"], packed["b_til"])

    # packed (np_total, 128) -> (B, S, H): wrapper-side reshape = free plumbing
    hidden_states = hs_packed.reshape(-1, H)[:N].reshape(B, S, H)

    # ----------------------- classification head (plain jnp) ------------------
    # Tiny (B x H) work: a separate pallas_call is pure launch overhead, so the
    # head runs as jnp with the mean-pool fused into the first dense.  Dropout
    # layers are identity at inference.
    n_pool = min(config.downsample_factor, S) if config.upsample_output else 1
    feats = hidden_states[:, :n_pool, :].reshape(B, n_pool * H)
    w1_fused = jnp.tile(packed["w1_t"], (n_pool, 1)) / float(n_pool)  # pool @ W1
    y = _gelu_exact(jnp.dot(feats, w1_fused) + packed["b1"])
    logits = jnp.dot(y, packed["w2_t"]) + packed["b2"]                # (B, L)

    loss = None
    if labels is not None:
        # torch.nn.CrossEntropyLoss (mean reduction, ignore_index=-100)
        labels_flat = labels.reshape(-1)
        valid = labels_flat != -100
        safe = jnp.where(valid, labels_flat, 0)
        logp = jax.nn.log_softmax(logits, axis=-1)
        nll = -jnp.take_along_axis(logp, safe[:, None], axis=1)[:, 0]
        denom = jnp.maximum(jnp.sum(valid.astype(jnp.float32)), 1.0)
        loss = jnp.sum(nll * valid.astype(jnp.float32)) / denom
    # SequenceClassifierOutput(loss, logits, hidden_states, attentions=None)
    return loss, logits, hidden_states


# ------------------------------ parameter init --------------------------------
def init_params(key, config):
    H, L = config.hidden_size, config.num_labels
    V, T = config.vocab_size, config.type_vocab_size
    ks = jax.random.split(key, 5)
    std = 0.02
    tok_emb = jax.random.normal(ks[0], (V, H), jnp.float32) * std
    type_emb = jax.random.normal(ks[1], (T, H), jnp.float32) * std
    we = jax.random.normal(ks[2], (H, H), jnp.float32) * std   # synthetic encoder
    w1 = jax.random.normal(ks[3], (H, H), jnp.float32) * std   # head.dense (out,in)
    w2 = jax.random.normal(ks[4], (L, H), jnp.float32) * std   # head.out_proj
    return dict(
        tok_emb=tok_emb, type_emb=type_emb,
        we_t=we.T, be=jnp.zeros((1, H), jnp.float32),
        w1_t=w1.T, b1=jnp.zeros((1, H), jnp.float32),          # biases init zero
        w2_t=w2.T, b2=jnp.zeros((1, L), jnp.float32),
    )


# ---------------------------- pure-jnp reference -------------------------------
def _reference_forward(raw, config, input_ids, attention_mask, token_type_ids):
    m = (attention_mask > 0).astype(jnp.float32)[..., None]
    emb = (raw["tok_emb"][input_ids] + raw["type_emb"][token_type_ids]) * m
    hidden = _gelu_exact(emb @ raw["we_t"] + raw["be"])
    S = input_ids.shape[1]
    n_pool = min(config.downsample_factor, S) if config.upsample_output else 1
    pooled = jnp.mean(hidden[:, :n_pool, :], axis=1)
    y = _gelu_exact(pooled @ raw["w1_t"] + raw["b1"])
    logits = y @ raw["w2_t"] + raw["b2"]
    return logits, hidden


# ----------------------------------- main --------------------------------------
if __name__ == "__main__":
    config = Config()
    key = jax.random.PRNGKey(0)
    kp, ki, kl = jax.random.split(key, 3)

    B, S = 2, 8
    raw_params = init_params(kp, config)
    packed_params = prepare_params(raw_params, config)

    input_ids = jax.random.randint(ki, (B, S), 0, config.vocab_size, dtype=jnp.int32)
    attention_mask = jnp.ones((B, S), dtype=jnp.int32)
    token_type_ids = jnp.zeros((B, S), dtype=jnp.int32)
    labels = jax.random.randint(kl, (B,), 0, config.num_labels, dtype=jnp.int32)

    loss, logits, hidden_states = electra_charformer_for_classification(
        packed_params, config, input_ids, attention_mask, token_type_ids, labels)
    jax.block_until_ready((loss, logits, hidden_states))

    assert logits.shape == (B, config.num_labels)
    assert hidden_states.shape == (B, S, config.hidden_size)

    # Loose tolerance check against a pure-f32 jnp reference of the same math
    # (kernel matmuls run in bf16 with f32 accumulation).
    logits_ref, hidden_ref = _reference_forward(
        raw_params, config, input_ids, attention_mask, token_type_ids)
    assert float(jnp.max(jnp.abs(hidden_states - hidden_ref))) < 1e-2
    assert float(jnp.max(jnp.abs(logits - logits_ref))) < 1e-2

    print("KERNEL_OK")
</pallas_src>

<mosaic_0001>
module attributes {stable_mosaic.version = 11 : i64} {
  func.func @_encoder_kernel(%arg0: i32, %arg1: memref<4x4xf32, #tpu.memory_space<vmem>>, %arg2: memref<4x4xf32, #tpu.memory_space<vmem>>, %arg3: memref<4x256xbf16, #tpu.memory_space<vmem>>, %arg4: memref<1x256xf32, #tpu.memory_space<vmem>>, %arg5: memref<256x128xbf16, #tpu.memory_space<vmem>>, %arg6: memref<4x128xbf16, #tpu.memory_space<vmem>>, %arg7: memref<128x128xbf16, #tpu.memory_space<vmem>>, %arg8: memref<1x128xf32, #tpu.memory_space<vmem>>, %arg9: memref<4x128xf32, #tpu.memory_space<vmem>>) attributes {dimension_semantics = [#tpu.dimension_semantics<parallel>], iteration_bounds = array<i64: 1>, scalar_prefetch = 0 : i64, scratch_operands = 0 : i64, tpu.core_type = #tpu.core_type<tc>, window_params = [{transform_indices = @transform_0, window_bounds = array<i64: 4, 4>}, {transform_indices = @transform_1, window_bounds = array<i64: 4, 4>}, {pipeline_mode = #tpu.pipeline_mode<synchronous>, transform_indices = @transform_2, window_bounds = array<i64: 4, 256>}, {pipeline_mode = #tpu.pipeline_mode<synchronous>, transform_indices = @transform_3, window_bounds = array<i64: 1, 256>}, {pipeline_mode = #tpu.pipeline_mode<synchronous>, transform_indices = @transform_4, window_bounds = array<i64: 256, 128>}, {pipeline_mode = #tpu.pipeline_mode<synchronous>, transform_indices = @transform_5, window_bounds = array<i64: 4, 128>}, {pipeline_mode = #tpu.pipeline_mode<synchronous>, transform_indices = @transform_6, window_bounds = array<i64: 128, 128>}, {pipeline_mode = #tpu.pipeline_mode<synchronous>, transform_indices = @transform_7, window_bounds = array<i64: 1, 128>}, {transform_indices = @transform_8, window_bounds = array<i64: 4, 128>}]} {
    %c0 = arith.constant 0 : index
    %c0_0 = arith.constant 0 : index
    %0 = vector.load %arg1[%c0, %c0_0] : memref<4x4xf32, #tpu.memory_space<vmem>>, vector<4x4xf32>
    %1 = arith.truncf %0 : vector<4x4xf32> to vector<4x4xbf16>
    %c0_1 = arith.constant 0 : index
    %c0_2 = arith.constant 0 : index
    %2 = vector.load %arg3[%c0_1, %c0_2] : memref<4x256xbf16, #tpu.memory_space<vmem>>, vector<4x256xbf16>
    %cst = arith.constant dense<0.000000e+00> : vector<4x256xf32>
    %3 = tpu.matmul %1, %2, %cst {dimension_numbers = #tpu.dot_dimension_numbers<[1], [0], [0], [1], [0, 0, 1, 1], [], []>} : vector<4x4xbf16>, vector<4x256xbf16>, vector<4x256xf32> -> vector<4x256xf32>
    %c0_3 = arith.constant 0 : index
    %c0_4 = arith.constant 0 : index
    %4 = vector.load %arg4[%c0_3, %c0_4] : memref<1x256xf32, #tpu.memory_space<vmem>>, vector<1x256xf32>
    %5 = vector.broadcast %4 : vector<1x256xf32> to vector<4x256xf32>
    %6 = arith.cmpf oeq, %3, %5 : vector<4x256xf32>
    %7 = arith.extui %6 : vector<4x256xi1> to vector<4x256xi32>
    %8 = arith.sitofp %7 : vector<4x256xi32> to vector<4x256xf32>
    %9 = arith.truncf %8 : vector<4x256xf32> to vector<4x256xbf16>
    %c0_5 = arith.constant 0 : index
    %c0_6 = arith.constant 0 : index
    %10 = vector.load %arg5[%c0_5, %c0_6] : memref<256x128xbf16, #tpu.memory_space<vmem>>, vector<256x128xbf16>
    %cst_7 = arith.constant dense<0.000000e+00> : vector<4x128xf32>
    %11 = tpu.matmul %9, %10, %cst_7 {dimension_numbers = #tpu.dot_dimension_numbers<[1], [0], [0], [1], [0, 0, 1, 1], [], []>} : vector<4x256xbf16>, vector<256x128xbf16>, vector<4x128xf32> -> vector<4x128xf32>
    %c0_8 = arith.constant 0 : index
    %c0_9 = arith.constant 0 : index
    %12 = vector.load %arg2[%c0_8, %c0_9] : memref<4x4xf32, #tpu.memory_space<vmem>>, vector<4x4xf32>
    %13 = arith.truncf %12 : vector<4x4xf32> to vector<4x4xbf16>
    %c0_10 = arith.constant 0 : index
    %c0_11 = arith.constant 0 : index
    %14 = vector.load %arg6[%c0_10, %c0_11] : memref<4x128xbf16, #tpu.memory_space<vmem>>, vector<4x128xbf16>
    %cst_12 = arith.constant dense<0.000000e+00> : vector<4x128xf32>
    %15 = tpu.matmul %13, %14, %cst_12 {dimension_numbers = #tpu.dot_dimension_numbers<[1], [0], [0], [1], [0, 0, 1, 1], [], []>} : vector<4x4xbf16>, vector<4x128xbf16>, vector<4x128xf32> -> vector<4x128xf32>
    %16 = arith.addf %11, %15 : vector<4x128xf32>
    %17 = arith.truncf %16 : vector<4x128xf32> to vector<4x128xbf16>
    %c0_13 = arith.constant 0 : index
    %c0_14 = arith.constant 0 : index
    %18 = vector.load %arg7[%c0_13, %c0_14] : memref<128x128xbf16, #tpu.memory_space<vmem>>, vector<128x128xbf16>
    %cst_15 = arith.constant dense<0.000000e+00> : vector<4x128xf32>
    %19 = tpu.matmul %17, %18, %cst_15 {dimension_numbers = #tpu.dot_dimension_numbers<[1], [0], [0], [1], [0, 0, 1, 1], [], []>} : vector<4x128xbf16>, vector<128x128xbf16>, vector<4x128xf32> -> vector<4x128xf32>
    %c0_16 = arith.constant 0 : index
    %c0_17 = arith.constant 0 : index
    %20 = vector.load %arg8[%c0_16, %c0_17] : memref<1x128xf32, #tpu.memory_space<vmem>>, vector<1x128xf32>
    %21 = vector.broadcast %20 : vector<1x128xf32> to vector<4x128xf32>
    %22 = arith.addf %19, %21 : vector<4x128xf32>
    %cst_18 = arith.constant 5.000000e-01 : f32
    %23 = vector.broadcast %cst_18 : f32 to vector<4x128xf32>
    %24 = arith.mulf %23, %22 : vector<4x128xf32>
    %cst_19 = arith.constant 0.707106769 : f32
    %25 = vector.broadcast %cst_19 : f32 to vector<4x128xf32>
    %26 = arith.mulf %22, %25 : vector<4x128xf32>
    %27 = math.erf %26 : vector<4x128xf32>
    %cst_20 = arith.constant 1.000000e+00 : f32
    %28 = vector.broadcast %cst_20 : f32 to vector<4x128xf32>
    %29 = arith.addf %28, %27 : vector<4x128xf32>
    %30 = arith.mulf %24, %29 : vector<4x128xf32>
    %c0_21 = arith.constant 0 : index
    %c0_22 = arith.constant 0 : index
    %31 = vector.load %arg9[%c0_21, %c0_22] : memref<4x128xf32, #tpu.memory_space<vmem>>, vector<4x128xf32>
    tpu.vector_store %arg9[%c0_21, %c0_22], %30 {strides = array<i32>} : memref<4x128xf32, #tpu.memory_space<vmem>>, vector<4x128xf32>,
    return
  }
  func.func @transform_0(%arg0: i32) -> (i32, i32) {
    %c0_i32 = arith.constant 0 : i32
    %c0_i32_0 = arith.constant 0 : i32
    return %arg0, %c0_i32 : i32, i32
  }
  func.func @transform_1(%arg0: i32) -> (i32, i32) {
    %c0_i32 = arith.constant 0 : i32
    %c0_i32_0 = arith.constant 0 : i32
    return %arg0, %c0_i32 : i32, i32
  }
  func.func @transform_2(%arg0: i32) -> (i32, i32) {
    %c0_i32 = arith.constant 0 : i32
    %c0_i32_0 = arith.constant 0 : i32
    %c0_i32_1 = arith.constant 0 : i32
    return %c0_i32, %c0_i32_0 : i32, i32
  }
  func.func @transform_3(%arg0: i32) -> (i32, i32) {
    %c0_i32 = arith.constant 0 : i32
    %c0_i32_0 = arith.constant 0 : i32
    %c0_i32_1 = arith.constant 0 : i32
    return %c0_i32, %c0_i32_0 : i32, i32
  }
  func.func @transform_4(%arg0: i32) -> (i32, i32) {
    %c0_i32 = arith.constant 0 : i32
    %c0_i32_0 = arith.constant 0 : i32
    %c0_i32_1 = arith.constant 0 : i32
    return %c0_i32, %c0_i32_0 : i32, i32
  }
  func.func @transform_5(%arg0: i32) -> (i32, i32) {
    %c0_i32 = arith.constant 0 : i32
    %c0_i32_0 = arith.constant 0 : i32
    %c0_i32_1 = arith.constant 0 : i32
    return %c0_i32, %c0_i32_0 : i32, i32
  }
  func.func @transform_6(%arg0: i32) -> (i32, i32) {
    %c0_i32 = arith.constant 0 : i32
    %c0_i32_0 = arith.constant 0 : i32
    %c0_i32_1 = arith.constant 0 : i32
    return %c0_i32, %c0_i32_0 : i32, i32
  }
  func.func @transform_7(%arg0: i32) -> (i32, i32) {
    %c0_i32 = arith.constant 0 : i32
    %c0_i32_0 = arith.constant 0 : i32
    %c0_i32_1 = arith.constant 0 : i32
    return %c0_i32, %c0_i32_0 : i32, i32
  }
  func.func @transform_8(%arg0: i32) -> (i32, i32) {
    %c0_i32 = arith.constant 0 : i32
    %c0_i32_0 = arith.constant 0 : i32
    return %arg0, %c0_i32 : i32, i32
  }
}

</mosaic_0001>

<llo_original>
// kernel: tpu_custom_call.1
$region0: #{tpu_custom_call.1}
  #allocation0 [shape = 'u32[]', space=smem, size = 0x4, offset = 0x4, fixed_abs, tag = 'smem constant byte address 0x4 - core index']
  #allocation1 [shape = 'u32[144,128]{1,0:T(1,128)}', space=vmem, size = 0x12000, scoped, tag = 'internal scratch']
  %s0 = inlined_call_operand.hbm [shape: f32[4,4], index: 0, kind: input, shape index: {}]
  %s1 = inlined_call_operand.hbm [shape: f32[4,4], index: 1, kind: input, shape index: {}]
  %s2 = inlined_call_operand.vmem [shape: bf16[4,256], index: 2, kind: input, shape index: {}]
  %s3 = inlined_call_operand.vmem [shape: f32[1,256], index: 3, kind: input, shape index: {}]
  %s4 = inlined_call_operand.hbm [shape: bf16[256,128], index: 4, kind: input, shape index: {}]
  %s5 = inlined_call_operand.vmem [shape: bf16[4,128], index: 5, kind: input, shape index: {}]
  %s6 = inlined_call_operand.hbm [shape: bf16[128,128], index: 6, kind: input, shape index: {}]
  %s7 = inlined_call_operand.vmem [shape: f32[1,128], index: 7, kind: input, shape index: {}]
  %s8 = inlined_call_operand.hbm [shape: f32[4,128], index: 8, kind: output, shape index: {}]
  %s9 = sld [smem:[#allocation0]]
  $region58: #{tpu_custom_call.1} parent=0
    _
  %s11 = ssub.s32 1, %s9
  %s12 = scalar_select 0, %s11, %s9
  $region1: #{tpu_custom_call.1} parent=0
    #allocation2 [shape = 'u8[2048]{0}', space=vmem, size = 0x800, scoped, tag = 'input window, operand 0, single buffered']
    #allocation3 [shape = 's32[1]{0}', space=sflag, size = 0x4, scoped, tag = 'scoped memory for tpu_custom_call.1']
    #allocation4 [shape = 's32[1]{0}', space=sflag, size = 0x4, scoped, tag = 'scoped memory for tpu_custom_call.1']
    #allocation5 [shape = 'u8[2048]{0}', space=vmem, size = 0x800, scoped, tag = 'input window, operand 1, single buffered']
    #allocation6 [shape = 's32[1]{0}', space=sflag, size = 0x4, scoped, tag = 'scoped memory for tpu_custom_call.1']
    #allocation7 [shape = 'u8[65536]{0}', space=vmem, size = 0x10000, scoped, tag = 'input window, operand 4, single buffered']
    #allocation8 [shape = 'u8[32768]{0}', space=vmem, size = 0x8000, scoped, tag = 'input window, operand 6, single buffered']
    #allocation9 [shape = 's32[1]{0}', space=sflag, size = 0x4, scoped, tag = 'scoped memory for tpu_custom_call.1']
    #allocation10 [shape = 'u8[2048]{0}', space=vmem, size = 0x800, scoped, tag = 'output window, operand 0, single buffered']
    %13 = vsyncpa [#allocation3], 0
    %14 = vsyncpa [#allocation6], 0
    %15 = vsyncpa [#allocation9], 0
    %16 = vsyncpa [#allocation4], 0
    // Predicated region
    $region2: #{tpu_custom_call.1} parent=1 // pred_check
      _
    $region3: #{tpu_custom_call.1} parent=1 // pred_check_branch
      %18 = sbr.rel (0) target = $region5
    $region4: #{tpu_custom_call.1} parent=1 // pred_region
      %s20 = ssub.s32 64, 64
      %21 = vsyncadd [#allocation3], %s20
      %s23 = sshll.u32 [#allocation2], 4
      %s24 = int_to_ptr.vmem [resolvable:$true] %s23
      %26 = dma.hbm_to_vmem [thread:$0]  %s0, 64, %s24, [#allocation3]
    $region5: #{tpu_custom_call.1} parent=1 // pred_fallthru
      _
    // Predicated region
    $region6: #{tpu_custom_call.1} parent=1 // pred_check
      _
    $region7: #{tpu_custom_call.1} parent=1 // pred_check_branch
      %28 = sbr.rel (0) target = $region9
    $region8: #{tpu_custom_call.1} parent=1 // pred_region
      %s30 = ssub.s32 64, 64
      %31 = vsyncadd [#allocation6], %s30
      %s33 = sshll.u32 [#allocation5], 4
      %s34 = int_to_ptr.vmem [resolvable:$true] %s33
      %36 = dma.hbm_to_vmem [thread:$0]  %s1, 64, %s34, [#allocation6]
    $region9: #{tpu_custom_call.1} parent=1 // pred_fallthru
      _
    // Predicated region
    $region10: #{tpu_custom_call.1} parent=1 // pred_check
      _
    $region11: #{tpu_custom_call.1} parent=1 // pred_check_branch
      %38 = sbr.rel (0) target = $region13
    $region12: #{tpu_custom_call.1} parent=1 // pred_region
      _
    $region13: #{tpu_custom_call.1} parent=1 // pred_fallthru
      _
    // Predicated region
    $region14: #{tpu_custom_call.1} parent=1 // pred_check
      _
    $region15: #{tpu_custom_call.1} parent=1 // pred_check_branch
      %40 = sbr.rel (0) target = $region17
    $region16: #{tpu_custom_call.1} parent=1 // pred_region
      _
    $region17: #{tpu_custom_call.1} parent=1 // pred_fallthru
      _
    // Predicated region
    $region18: #{tpu_custom_call.1} parent=1 // pred_check
      _
    $region19: #{tpu_custom_call.1} parent=1 // pred_check_branch
      %42 = sbr.rel (0) target = $region21
    $region20: #{tpu_custom_call.1} parent=1 // pred_region
      %s44 = ssub.s32 2048, 2048
      %45 = vsyncadd [#allocation6], %s44
      %s46 = sshll.u32 [#allocation7], 4
      %s47 = int_to_ptr.vmem [resolvable:$true] %s46
      %52 = dma.hbm_to_vmem [thread:$0]  %s4, 2048, %s47, [#allocation6], 64, 64, 4
    $region21: #{tpu_custom_call.1} parent=1 // pred_fallthru
      _
    // Predicated region
    $region22: #{tpu_custom_call.1} parent=1 // pred_check
      _
    $region23: #{tpu_custom_call.1} parent=1 // pred_check_branch
      %54 = sbr.rel (0) target = $region25
    $region24: #{tpu_custom_call.1} parent=1 // pred_region
      _
    $region25: #{tpu_custom_call.1} parent=1 // pred_fallthru
      _
    // Predicated region
    $region26: #{tpu_custom_call.1} parent=1 // pred_check
      _
    $region27: #{tpu_custom_call.1} parent=1 // pred_check_branch
      %56 = sbr.rel (0) target = $region29
    $region28: #{tpu_custom_call.1} parent=1 // pred_region
      %s58 = ssub.s32 1024, 1024
      %59 = vsyncadd [#allocation9], %s58
      %s60 = sshll.u32 [#allocation8], 4
      %s61 = int_to_ptr.vmem [resolvable:$true] %s60
      %66 = dma.hbm_to_vmem [thread:$0]  %s6, 1024, %s61, [#allocation9], 64, 64, 4
    $region29: #{tpu_custom_call.1} parent=1 // pred_fallthru
      _
    // Predicated region
    $region30: #{tpu_custom_call.1} parent=1 // pred_check
      _
    $region31: #{tpu_custom_call.1} parent=1 // pred_check_branch
      %68 = sbr.rel (0) target = $region33
    $region32: #{tpu_custom_call.1} parent=1 // pred_region
      _
    $region33: #{tpu_custom_call.1} parent=1 // pred_fallthru
      _
    // Predicated region
    $region34: #{tpu_custom_call.1} parent=1 // pred_check
      _
    $region35: #{tpu_custom_call.1} parent=1 // pred_check_branch
      %70 = sbr.rel (0) target = $region37
    $region36: #{tpu_custom_call.1} parent=1 // pred_region
      %71 = dma.done [#allocation3], 64
    $region37: #{tpu_custom_call.1} parent=1 // pred_fallthru
      _
    // Predicated region
    $region38: #{tpu_custom_call.1} parent=1 // pred_check
      _
    $region39: #{tpu_custom_call.1} parent=1 // pred_check_branch
      %73 = sbr.rel (0) target = $region41
    $region40: #{tpu_custom_call.1} parent=1 // pred_region
      %74 = dma.done [#allocation6], 64
    $region41: #{tpu_custom_call.1} parent=1 // pred_fallthru
      _
    // Predicated region
    $region42: #{tpu_custom_call.1} parent=1 // pred_check
      _
    $region43: #{tpu_custom_call.1} parent=1 // pred_check_branch
      %76 = sbr.rel (0) target = $region45
    $region44: #{tpu_custom_call.1} parent=1 // pred_region
      %77 = dma.done [#allocation6], 2048
    $region45: #{tpu_custom_call.1} parent=1 // pred_fallthru
      _
    // Predicated region
    $region46: #{tpu_custom_call.1} parent=1 // pred_check
      _
    $region47: #{tpu_custom_call.1} parent=1 // pred_check_branch
      %79 = sbr.rel (0) target = $region49
    $region48: #{tpu_custom_call.1} parent=1 // pred_region
      %80 = dma.done [#allocation9], 1024
    $region49: #{tpu_custom_call.1} parent=1 // pred_fallthru
      _
    %v82 = vld [vmem:[#allocation2] sm:$0xf]
    %v83 = vpack.c.bf16 %v82, %v82
    %v84 = vld [vmem:[%s2] sm:$0xf]
    %v87 = vunpack.c.l.s4 1983009808
    %v88 = vunpack.c.0.s8 %v87
    %v89 = vlaneseq
    %v90 = vshrl.u32 %v89, 7
    %v91 = vsub.s32 %v88, %v90
    %v92 = vrot.slane %v84, %v91
    %v93 = vcombine.high %v92, %v92
    %vm94 = vcmask 31744
    %v96 = vsel %vm94, %v83, 0
    %vm98 = vcmask 1041408
    %v100 = vsel %vm98, %v92, 0
    %v103 = vsel %vm98, %v93, 0
    %105 = vmatprep.subr.bf16.mxu0 %v103
    %106 = vmatpush1.bf16.msra.mxu0 %v100
    %107 = vmatprep.subr.bf16.mxu0 0
    %108 = vmatpush1.bf16.msra.mxu0 0
    %109 = vmatprep.subr.bf16.mxu0 0
    %110 = vmatpush1.bf16.msra.mxu0 0
    %111 = vmatprep.subr.bf16.mxu0 0
    %112 = vmatpush1.bf16.msra.mxu0 0
    %113 = vmatprep.subr.bf16.mxu0 0
    %114 = vmatpush1.bf16.msra.mxu0 0
    %115 = vmatprep.subr.bf16.mxu0 0
    %116 = vmatpush1.bf16.msra.mxu0 0
    %117 = vmatprep.subr.bf16.mxu0 0
    %118 = vmatpush1.bf16.msra.mxu0 0
    %119 = vmatprep.subr.bf16.mxu0 0
    %120 = vmatpush1.bf16.msra.mxu0 0
    %121 = vmatprep.subr.bf16.mxu0 0
    %122 = vmatpush1.bf16.msra.mxu0 0
    %123 = vmatprep.subr.bf16.mxu0 0
    %124 = vmatpush1.bf16.msra.mxu0 0
    %125 = vmatprep.subr.bf16.mxu0 0
    %126 = vmatpush1.bf16.msra.mxu0 0
    %127 = vmatprep.subr.bf16.mxu0 0
    %128 = vmatpush1.bf16.msra.mxu0 0
    %129 = vmatprep.subr.bf16.mxu0 0
    %130 = vmatpush1.bf16.msra.mxu0 0
    %131 = vmatprep.subr.bf16.mxu0 0
    %132 = vmatpush1.bf16.msra.mxu0 0
    %133 = vmatprep.subr.bf16.mxu0 0
    %134 = vmatpush1.bf16.msra.mxu0 0
    %135 = vmatprep.subr.bf16.mxu0 0
    %136 = vmatpush1.bf16.msra.mxu0 0
    %137 = vmatprep.mubr.bf16.mxu0 0
    %138 = vmatmul.mubr.bf16.gmra.mrb[0].mxu0 %v96
    %v139 = vpop.f32.mrb[0].mxu0
    %v140 = vadd.f32 0.0, %v139
    %v141 = vpop.f32.mrb[0].mxu0
    %v142 = vadd.f32 0.0, %v141
    %v143 = vpop.f32.mrb[0].mxu0
    %v144 = vpop.f32.mrb[0].mxu0
    %145 = vdwg.mxu0
    %v146 = vld [vmem:[%s3] sm:$0x3]
    %v148 = vlaneseq
    %v149 = vshrl.u32 %v148, 7
    %v150 = vsub.s32 0, %v149
    %v151 = vrot.slane %v146, %v150
    %v152 = vlaneseq
    %v153 = vshrl.u32 %v152, 7
    %v154 = vsub.s32 1, %v153
    %v155 = vrot.slane %v146, %v154
    %vm158 = vcmp.eq.f32.partialorder %v140, %v151
    %vm159 = vcmp.eq.f32.partialorder %v142, %v155
    %v160 = vsel %vm158, 1, 0
    %v161 = vsel %vm159, 1, 0
    %v162 = vcvt.s32.f32 %v160
    %v163 = vcvt.s32.f32 %v161
    %v164 = vpack.c.bf16 %v162, %v162
    %v165 = vpack.c.bf16 %v163, %v163
    %v166 = vld [vmem:[#allocation7] sm:$0xf]
    %v167 = vld [vmem:[#allocation7 + $0x4] sm:$0xf]
    %v168 = vld [vmem:[#allocation7 + $0x8] sm:$0xf]
    %v169 = vld [vmem:[#allocation7 + $0xc] sm:$0xf]
    %v170 = vld [vmem:[#allocation7 + $0x10] sm:$0xf]
    %v171 = vld [vmem:[#allocation7 + $0x14] sm:$0xf]
    %v172 = vld [vmem:[#allocation7 + $0x18] sm:$0xf]
    %v173 = vld [vmem:[#allocation7 + $0x1c] sm:$0xf]
    %v174 = vld [vmem:[#allocation7 + $0x20] sm:$0xf]
    %v175 = vld [vmem:[#allocation7 + $0x24] sm:$0xf]
    %v176 = vld [vmem:[#allocation7 + $0x28] sm:$0xf]
    %v177 = vld [vmem:[#allocation7 + $0x2c] sm:$0xf]
    %v178 = vld [vmem:[#allocation7 + $0x30] sm:$0xf]
    %v179 = vld [vmem:[#allocation7 + $0x34] sm:$0xf]
    %v180 = vld [vmem:[#allocation7 + $0x38] sm:$0xf]
    %v181 = vld [vmem:[#allocation7 + $0x3c] sm:$0xf]
    %v182 = vld [vmem:[#allocation7 + $0x40] sm:$0xf]
    %v183 = vld [vmem:[#allocation7 + $0x44] sm:$0xf]
    %v184 = vld [vmem:[#allocation7 + $0x48] sm:$0xf]
    %v185 = vld [vmem:[#allocation7 + $0x4c] sm:$0xf]
    %v186 = vld [vmem:[#allocation7 + $0x50] sm:$0xf]
    %v187 = vld [vmem:[#allocation7 + $0x54] sm:$0xf]
    %v188 = vld [vmem:[#allocation7 + $0x58] sm:$0xf]
    %v189 = vld [vmem:[#allocation7 + $0x5c] sm:$0xf]
    %v190 = vld [vmem:[#allocation7 + $0x60] sm:$0xf]
    %v191 = vld [vmem:[#allocation7 + $0x64] sm:$0xf]
    %v192 = vld [vmem:[#allocation7 + $0x68] sm:$0xf]
    %v193 = vld [vmem:[#allocation7 + $0x6c] sm:$0xf]
    %v194 = vld [vmem:[#allocation7 + $0x70] sm:$0xf]
    %v195 = vld [vmem:[#allocation7 + $0x74] sm:$0xf]
    %v196 = vld [vmem:[#allocation7 + $0x78] sm:$0xf]
    %v197 = vld [vmem:[#allocation7 + $0x7c] sm:$0xf]
    %v198 = vld [vmem:[#allocation5] sm:$0xf]
    %v199 = vpack.c.bf16 %v198, %v198
    %v200 = vld [vmem:[%s5] sm:$0x3]
    %v202 = vsel %vm94, %v199, 0
    %v205 = vsel %vm98, %v200, 0
    %207 = vmatprep.subr.bf16.mxu0 0
    %208 = vmatpush1.bf16.msra.mxu0 %v205
    %209 = vmatprep.subr.bf16.mxu0 0
    %210 = vmatpush1.bf16.msra.mxu0 0
    %211 = vmatprep.subr.bf16.mxu0 0
    %212 = vmatpush1.bf16.msra.mxu0 0
    %213 = vmatprep.subr.bf16.mxu0 0
    %214 = vmatpush1.bf16.msra.mxu0 0
    %215 = vmatprep.subr.bf16.mxu0 0
    %216 = vmatpush1.bf16.msra.mxu0 0
    %217 = vmatprep.subr.bf16.mxu0 0
    %218 = vmatpush1.bf16.msra.mxu0 0
    %219 = vmatprep.subr.bf16.mxu0 0
    %220 = vmatpush1.bf16.msra.mxu0 0
    %221 = vmatprep.subr.bf16.mxu0 0
    %222 = vmatpush1.bf16.msra.mxu0 0
    %223 = vmatprep.subr.bf16.mxu0 0
    %224 = vmatpush1.bf16.msra.mxu0 0
    %225 = vmatprep.subr.bf16.mxu0 0
    %226 = vmatpush1.bf16.msra.mxu0 0
    %227 = vmatprep.subr.bf16.mxu0 0
    %228 = vmatpush1.bf16.msra.mxu0 0
    %229 = vmatprep.subr.bf16.mxu0 0
    %230 = vmatpush1.bf16.msra.mxu0 0
    %231 = vmatprep.subr.bf16.mxu0 0
    %232 = vmatpush1.bf16.msra.mxu0 0
    %233 = vmatprep.subr.bf16.mxu0 0
    %234 = vmatpush1.bf16.msra.mxu0 0
    %235 = vmatprep.subr.bf16.mxu0 0
    %236 = vmatpush1.bf16.msra.mxu0 0
    %237 = vmatprep.subr.bf16.mxu0 0
    %238 = vmatpush1.bf16.msra.mxu0 0
    %239 = vmatprep.mubr.bf16.mxu0 0
    %240 = vmatmul.mubr.bf16.gmra.mrb[0].mxu0 %v202
    %v241 = vpop.f32.mrb[0].mxu0
    %v242 = vadd.f32 0.0, %v241
    %v243 = vpop.f32.mrb[0].mxu0
    %v244 = vpop.f32.mrb[0].mxu0
    %v245 = vpop.f32.mrb[0].mxu0
    %246 = vdwg.mxu0
    %v279 = vunpack.c.l.b16 %v166
    %v280 = vunpack.c.l.b16 %v167
    %v281 = vunpack.c.l.b16 %v168
    %v282 = vunpack.c.l.b16 %v169
    %v283 = vunpack.c.l.b16 %v170
    %v284 = vunpack.c.l.b16 %v171
    %v285 = vunpack.c.l.b16 %v172
    %v286 = vunpack.c.l.b16 %v173
    %v287 = vunpack.c.l.b16 %v174
    %v288 = vunpack.c.l.b16 %v175
    %v289 = vunpack.c.l.b16 %v176
    %v290 = vunpack.c.l.b16 %v177
    %v291 = vunpack.c.l.b16 %v178
    %v292 = vunpack.c.l.b16 %v179
    %v293 = vunpack.c.l.b16 %v180
    %v294 = vunpack.c.l.b16 %v181
    %v295 = vunpack.c.l.b16 %v182
    %v296 = vunpack.c.l.b16 %v183
    %v297 = vunpack.c.l.b16 %v184
    %v298 = vunpack.c.l.b16 %v185
    %v299 = vunpack.c.l.b16 %v186
    %v300 = vunpack.c.l.b16 %v187
    %v301 = vunpack.c.l.b16 %v188
    %v302 = vunpack.c.l.b16 %v189
    %v303 = vunpack.c.l.b16 %v190
    %v304 = vunpack.c.l.b16 %v191
    %v305 = vunpack.c.l.b16 %v192
    %v306 = vunpack.c.l.b16 %v193
    %v307 = vunpack.c.l.b16 %v194
    %v308 = vunpack.c.l.b16 %v195
    %v309 = vunpack.c.l.b16 %v196
    %v310 = vunpack.c.l.b16 %v197
    %v311 = vpack.c.b16 %v280, %v279
    %v312 = vpack.c.b16 %v282, %v281
    %v313 = vpack.c.b16 %v284, %v283
    %v314 = vpack.c.b16 %v286, %v285
    %v315 = vpack.c.b16 %v288, %v287
    %v316 = vpack.c.b16 %v290, %v289
    %v317 = vpack.c.b16 %v292, %v291
    %v318 = vpack.c.b16 %v294, %v293
    %v319 = vpack.c.b16 %v296, %v295
    %v320 = vpack.c.b16 %v298, %v297
    %v321 = vpack.c.b16 %v300, %v299
    %v322 = vpack.c.b16 %v302, %v301
    %v323 = vpack.c.b16 %v304, %v303
    %v324 = vpack.c.b16 %v306, %v305
    %v325 = vpack.c.b16 %v308, %v307
    %v326 = vpack.c.b16 %v310, %v309
    %343 = vmatprep.subr.bf16.mxu0 0
    %344 = vmatpush1.bf16.msra.mxu0 %v311
    %345 = vmatprep.subr.bf16.mxu0 0
    %346 = vmatpush1.bf16.msra.mxu0 %v312
    %347 = vmatprep.subr.bf16.mxu0 0
    %348 = vmatpush1.bf16.msra.mxu0 %v313
    %349 = vmatprep.subr.bf16.mxu0 0
    %350 = vmatpush1.bf16.msra.mxu0 %v314
    %351 = vmatprep.subr.bf16.mxu0 0
    %352 = vmatpush1.bf16.msra.mxu0 %v315
    %353 = vmatprep.subr.bf16.mxu0 0
    %354 = vmatpush1.bf16.msra.mxu0 %v316
    %355 = vmatprep.subr.bf16.mxu0 0
    %356 = vmatpush1.bf16.msra.mxu0 %v317
    %357 = vmatprep.subr.bf16.mxu0 0
    %358 = vmatpush1.bf16.msra.mxu0 %v318
    %359 = vmatprep.subr.bf16.mxu0 0
    %360 = vmatpush1.bf16.msra.mxu0 %v319
    %361 = vmatprep.subr.bf16.mxu0 0
    %362 = vmatpush1.bf16.msra.mxu0 %v320
    %363 = vmatprep.subr.bf16.mxu0 0
    %364 = vmatpush1.bf16.msra.mxu0 %v321
    %365 = vmatprep.subr.bf16.mxu0 0
    %366 = vmatpush1.bf16.msra.mxu0 %v322
    %367 = vmatprep.subr.bf16.mxu0 0
    %368 = vmatpush1.bf16.msra.mxu0 %v323
    %369 = vmatprep.subr.bf16.mxu0 0
    %370 = vmatpush1.bf16.msra.mxu0 %v324
    %371 = vmatprep.subr.bf16.mxu0 0
    %372 = vmatpush1.bf16.msra.mxu0 %v325
    %373 = vmatprep.subr.bf16.mxu0 0
    %374 = vmatpush1.bf16.msra.mxu0 %v326
    %375 = vmatprep.mubr.bf16.mxu0 %v165
    %376 = vmatmul.mubr.bf16.gmra.mrb[0].mxu0 %v164
    %v377 = vpop.f32.mrb[0].mxu0
    %v378 = vadd.f32 %v242, %v377
    %v379 = vpop.f32.mrb[0].mxu0
    %v380 = vpop.f32.mrb[0].mxu0
    %v381 = vpop.f32.mrb[0].mxu0
    %382 = vdwg.mxu0
    %v383 = vpack.c.bf16 %v378, %v378
    %v384 = vld [vmem:[#allocation8] sm:$0xf]
    %v385 = vld [vmem:[#allocation8 + $0x4] sm:$0xf]
    %v386 = vld [vmem:[#allocation8 + $0x8] sm:$0xf]
    %v387 = vld [vmem:[#allocation8 + $0xc] sm:$0xf]
    %v388 = vld [vmem:[#allocation8 + $0x10] sm:$0xf]
    %v389 = vld [vmem:[#allocation8 + $0x14] sm:$0xf]
    %v390 = vld [vmem:[#allocation8 + $0x18] sm:$0xf]
    %v391 = vld [vmem:[#allocation8 + $0x1c] sm:$0xf]
    %v392 = vld [vmem:[#allocation8 + $0x20] sm:$0xf]
    %v393 = vld [vmem:[#allocation8 + $0x24] sm:$0xf]
    %v394 = vld [vmem:[#allocation8 + $0x28] sm:$0xf]
    %v395 = vld [vmem:[#allocation8 + $0x2c] sm:$0xf]
    %v396 = vld [vmem:[#allocation8 + $0x30] sm:$0xf]
    %v397 = vld [vmem:[#allocation8 + $0x34] sm:$0xf]
    %v398 = vld [vmem:[#allocation8 + $0x38] sm:$0xf]
    %v399 = vld [vmem:[#allocation8 + $0x3c] sm:$0xf]
    %v400 = vld [vmem:[%s7] sm:$0x1]
    %v402 = vlaneseq
    %v403 = vshrl.u32 %v402, 7
    %v404 = vsub.s32 0, %v403
    %v405 = vrot.slane %v400, %v404
    %v423 = vunpack.c.l.b16 %v384
    %v424 = vunpack.c.l.b16 %v385
    %v425 = vunpack.c.l.b16 %v386
    %v426 = vunpack.c.l.b16 %v387
    %v427 = vunpack.c.l.b16 %v388
    %v428 = vunpack.c.l.b16 %v389
    %v429 = vunpack.c.l.b16 %v390
    %v430 = vunpack.c.l.b16 %v391
    %v431 = vunpack.c.l.b16 %v392
    %v432 = vunpack.c.l.b16 %v393
    %v433 = vunpack.c.l.b16 %v394
    %v434 = vunpack.c.l.b16 %v395
    %v435 = vunpack.c.l.b16 %v396
    %v436 = vunpack.c.l.b16 %v397
    %v437 = vunpack.c.l.b16 %v398
    %v438 = vunpack.c.l.b16 %v399
    %v439 = vpack.c.b16 %v424, %v423
    %v440 = vpack.c.b16 %v426, %v425
    %v441 = vpack.c.b16 %v428, %v427
    %v442 = vpack.c.b16 %v430, %v429
    %v443 = vpack.c.b16 %v432, %v431
    %v444 = vpack.c.b16 %v434, %v433
    %v445 = vpack.c.b16 %v436, %v435
    %v446 = vpack.c.b16 %v438, %v437
    %455 = vmatprep.subr.bf16.mxu0 0
    %456 = vmatpush1.bf16.msra.mxu0 %v439
    %457 = vmatprep.subr.bf16.mxu0 0
    %458 = vmatpush1.bf16.msra.mxu0 %v440
    %459 = vmatprep.subr.bf16.mxu0 0
    %460 = vmatpush1.bf16.msra.mxu0 %v441
    %461 = vmatprep.subr.bf16.mxu0 0
    %462 = vmatpush1.bf16.msra.mxu0 %v442
    %463 = vmatprep.subr.bf16.mxu0 0
    %464 = vmatpush1.bf16.msra.mxu0 %v443
    %465 = vmatprep.subr.bf16.mxu0 0
    %466 = vmatpush1.bf16.msra.mxu0 %v444
    %467 = vmatprep.subr.bf16.mxu0 0
    %468 = vmatpush1.bf16.msra.mxu0 %v445
    %469 = vmatprep.subr.bf16.mxu0 0
    %470 = vmatpush1.bf16.msra.mxu0 %v446
    %471 = vmatprep.subr.bf16.mxu0 0
    %472 = vmatpush1.bf16.msra.mxu0 0
    %473 = vmatprep.subr.bf16.mxu0 0
    %474 = vmatpush1.bf16.msra.mxu0 0
    %475 = vmatprep.subr.bf16.mxu0 0
    %476 = vmatpush1.bf16.msra.mxu0 0
    %477 = vmatprep.subr.bf16.mxu0 0
    %478 = vmatpush1.bf16.msra.mxu0 0
    %479 = vmatprep.subr.bf16.mxu0 0
    %480 = vmatpush1.bf16.msra.mxu0 0
    %481 = vmatprep.subr.bf16.mxu0 0
    %482 = vmatpush1.bf16.msra.mxu0 0
    %483 = vmatprep.subr.bf16.mxu0 0
    %484 = vmatpush1.bf16.msra.mxu0 0
    %485 = vmatprep.subr.bf16.mxu0 0
    %486 = vmatpush1.bf16.msra.mxu0 0
    %487 = vmatprep.mubr.bf16.mxu0 0
    %488 = vmatmul.mubr.bf16.gmra.mrb[0].mxu0 %v383
    %v489 = vpop.f32.mrb[0].mxu0
    %v490 = vadd.f32 %v405, %v489
    %v491 = vpop.f32.mrb[0].mxu0
    %v492 = vpop.f32.mrb[0].mxu0
    %v493 = vpop.f32.mrb[0].mxu0
    %494 = vdwg.mxu0
    %v495 = vmul.f32 %v490, 0.5
    %v496 = vmul.f32 %v490, 0.70710677
    %v497 = verf.f32.pop %v496
    %v498 = vadd.f32 %v497, 1.0
    %v499 = vmul.f32 %v495, %v498
    %500 = vst [vmem:[#allocation10] sm:$0xf] %v499
    // Predicated region
    $region50: #{tpu_custom_call.1} parent=1 // pred_check
      _
    $region51: #{tpu_custom_call.1} parent=1 // pred_check_branch
      %502 = sbr.rel (0) target = $region53
    $region52: #{tpu_custom_call.1} parent=1 // pred_region
      %s504 = ssub.s32 64, 64
      %505 = vsyncadd [#allocation4], %s504
      %s507 = sshll.u32 [#allocation10], 4
      %s508 = int_to_ptr.vmem [resolvable:$true] %s507
      %510 = dma.vmem_to_hbm [thread:$0]  %s508, 64, %s8, [#allocation4]
    $region53: #{tpu_custom_call.1} parent=1 // pred_fallthru
      _
    // Predicated region
    $region54: #{tpu_custom_call.1} parent=1 // pred_check
      _
    $region55: #{tpu_custom_call.1} parent=1 // pred_check_branch
      %512 = sbr.rel (0) target = $region57
    $region56: #{tpu_custom_call.1} parent=1 // pred_region
      %513 = dma.done [#allocation4], 64
    $region57: #{tpu_custom_call.1} parent=1 // pred_fallthru
      _
    %514 = vsyncpa [#allocation3], 1
    %515 = vsyncpa [#allocation6], 1
    %516 = vsyncpa [#allocation9], 1
    %517 = vsyncpa [#allocation4], 1

</llo_original>
